<compile_context>
chip_gen: v5e
topology: v5e:2x2
jax: 0.10.0
libtpu: 0.0.40
codegen_flags: <defaults>
</compile_context>

<pallas_src>
import jax
import jax.numpy as jnp
from jax import lax
from jax.experimental import pallas as pl
from jax.experimental.pallas import tpu as pltpu


def _qkv_projection_kernel(x_ref, w_ref, o_ref):
    # One wide matmul per (batch, token-tile): (tt, d) @ (d, heads*(2*dh+d_pad)).
    o_ref[0] = jnp.dot(x_ref[0], w_ref[...],
                       preferred_element_type=jnp.float32).astype(o_ref.dtype)


def _flash_attention_kernel(q_ref, k_ref, vw_ref, o_ref, m_scr, l_scr, acc_scr):
    kvi = pl.program_id(2)

    @pl.when(kvi == 0)
    def _init():
        m_scr[...] = jnp.full(m_scr.shape, -jnp.inf, dtype=m_scr.dtype)
        l_scr[...] = jnp.zeros(l_scr.shape, dtype=l_scr.dtype)
        acc_scr[...] = jnp.zeros(acc_scr.shape, dtype=acc_scr.dtype)

    q = q_ref[0]        # (heads, tq, dh)     bf16, 1/sqrt(dh) folded into Wq
    k = k_ref[0]        # (heads, tkv, dh)    bf16
    vw = vw_ref[0]      # (heads, tkv, d_pad) bf16 (= V @ Wu, zero-padded)

    # Scores: contract the last dim of both operands (NT form, no K transpose).
    s = lax.dot_general(q, k, (((2,), (2,)), ((0,), (0,))),
                        preferred_element_type=jnp.float32)      # (h, tq, tkv) f32

    # Online-softmax update (all f32 on the softmax path).
    m_prev = m_scr[...]
    m_new = jnp.maximum(m_prev, jnp.max(s, axis=-1, keepdims=True))
    alpha = jnp.exp(m_prev - m_new)
    p = jnp.exp(s - m_new)
    l_scr[...] = alpha * l_scr[...] + jnp.sum(p, axis=-1, keepdims=True)
    pv = lax.dot_general(p.astype(vw.dtype), vw, (((2,), (1,)), ((0,), (0,))),
                         preferred_element_type=jnp.float32)     # (h, tq, d_pad)
    acc_scr[...] = alpha * acc_scr[...] + pv
    m_scr[...] = m_new

    @pl.when(kvi == pl.num_programs(2) - 1)
    def _finalize():
        inv_l = pl.reciprocal(l_scr[...], approx=True)           # EUP slot
        # Unify-heads already folded into vw: normalize + sum over heads only.
        o_ref[0] = jnp.sum(acc_scr[...] * inv_l, axis=0).astype(o_ref.dtype)


def _pick_tile(n, target):
    """Largest divisor of n that is <= target and a multiple of 8 (sublane
    aligned); never produces ragged kv tiles (zero padding would corrupt the
    softmax)."""
    if n <= target:
        return n
    for cand in range(min(target, n), 0, -1):
        if n % cand == 0 and cand % 8 == 0:
            return cand
    # TODO(synk): pad t to a block multiple + iota -inf mask instead of
    # de-tiling when t has no suitable divisor (pathological t only).
    return n


def _vmem_limit_bytes():
    try:
        cap = int(pltpu.get_tpu_info().vmem_capacity_bytes)
    except Exception:
        cap = 64 * 2 ** 20       # conservative fallback (v7x per-TC physical)
    return int(min(max(3 * cap // 4, 32 * 2 ** 20), 100 * 2 ** 20))


def self_attention(x, wq, wk, wv, wu, *, heads, block_q=256, block_kv=256,
                   block_proj=512, compute_dtype=jnp.bfloat16):
    """x: (b, t, d).  wq/wk/wv: (d, heads*dh) (= PyTorch weight.T).  wu: (heads*dh, d)."""
    b, t, d = x.shape
    hk = wq.shape[1]
    dh = hk // heads
    d_out = wu.shape[1]
    d_pad = ((d_out + 127) // 128) * 128     # lane-dense output width

    # ---- one-time weight preprocessing (tiny XLA ops on the weights) ----
    scale = 1.0 / (float(dh) ** 0.5)         # q/dh^.25 and k/dh^.25 -> 1/sqrt(dh)
    wq_s = wq * scale
    # Fold unify-heads into the V projection: (x Wv_h) Wu_h == x (Wv_h Wu_h).
    wvu = jnp.einsum("dhj,hjo->dho", wv.reshape(d, heads, dh),
                     wu.reshape(heads, dh, d_out))               # (d, h, d_out) f32
    wvu = jnp.pad(wvu, ((0, 0), (0, 0), (0, d_pad - d_out)))     # (d, h, d_pad)
    w_fused = jnp.concatenate(
        [wq_s, wk, wvu.reshape(d, heads * d_pad)], axis=1).astype(compute_dtype)
    wcols = w_fused.shape[1]                 # heads * (2*dh + d_pad)

    x_c = x.astype(compute_dtype)            # halve activation DMA bytes
    vmem_limit = _vmem_limit_bytes()

    # ---- prologue: fused QKV (+ Wu-folded V) projection, one wide matmul ----
    tt = _pick_tile(t, block_proj)
    qkv = pl.pallas_call(
        _qkv_projection_kernel,
        out_shape=jax.ShapeDtypeStruct((b, t, wcols), compute_dtype),
        grid_spec=pltpu.PrefetchScalarGridSpec(
            num_scalar_prefetch=0,
            grid=(b, t // tt),
            in_specs=[
                pl.BlockSpec((1, tt, d), lambda bi, ti: (bi, ti, 0)),
                pl.BlockSpec((d, wcols), lambda bi, ti: (0, 0)),   # grid-invariant
            ],
            out_specs=pl.BlockSpec((1, tt, wcols), lambda bi, ti: (bi, ti, 0)),
        ),
        compiler_params=pltpu.CompilerParams(
            dimension_semantics=("parallel", "parallel"),
            vmem_limit_bytes=vmem_limit),
    )(x_c, w_fused)

    # Head-major relayout once, outside the flash kernel (plain XLA ops).
    q = qkv[..., :heads * dh].reshape(b, t, heads, dh).transpose(0, 2, 1, 3)
    k_ = qkv[..., heads * dh:2 * heads * dh].reshape(b, t, heads, dh).transpose(0, 2, 1, 3)
    vw = qkv[..., 2 * heads * dh:].reshape(b, t, heads, d_pad).transpose(0, 2, 1, 3)

    # ---- flash attention (online softmax, kv as trailing arbitrary axis) ----
    tq = _pick_tile(t, block_q)
    tkv = _pick_tile(t, block_kv)
    grid = (b, t // tq, t // tkv)

    out_pad = pl.pallas_call(
        _flash_attention_kernel,
        out_shape=jax.ShapeDtypeStruct((b, t, d_pad), x.dtype),
        grid_spec=pltpu.PrefetchScalarGridSpec(
            num_scalar_prefetch=0,
            grid=grid,
            in_specs=[
                pl.BlockSpec((1, heads, tq, dh), lambda bi, qi, ki: (bi, 0, qi, 0)),
                pl.BlockSpec((1, heads, tkv, dh), lambda bi, qi, ki: (bi, 0, ki, 0)),
                pl.BlockSpec((1, heads, tkv, d_pad), lambda bi, qi, ki: (bi, 0, ki, 0)),
            ],
            out_specs=pl.BlockSpec((1, tq, d_pad), lambda bi, qi, ki: (bi, qi, 0)),
            scratch_shapes=[
                pltpu.VMEM((heads, tq, 1), jnp.float32),      # running max m
                pltpu.VMEM((heads, tq, 1), jnp.float32),      # running sum l
                pltpu.VMEM((heads, tq, d_pad), jnp.float32),  # output accumulator
            ],
        ),
        compiler_params=pltpu.CompilerParams(
            dimension_semantics=("parallel", "parallel", "arbitrary"),
            vmem_limit_bytes=vmem_limit),
    )(q, k_, vw)

    return out_pad[..., :d_out]


def self_attention_ref(x, wq, wk, wv, wu, *, heads):
    """Pure-JAX (f32) reference reproducing the PyTorch forward exactly."""
    b, t, k = x.shape
    h = heads
    queries = (x @ wq).reshape(b, t, h, k)
    keys = (x @ wk).reshape(b, t, h, k)
    values = (x @ wv).reshape(b, t, h, k)
    queries = jnp.transpose(queries, (0, 2, 1, 3)).reshape(b * h, t, k)
    keys = jnp.transpose(keys, (0, 2, 1, 3)).reshape(b * h, t, k)
    values = jnp.transpose(values, (0, 2, 1, 3)).reshape(b * h, t, k)
    queries = queries / k ** 0.25
    keys = keys / k ** 0.25
    dot = jnp.einsum("btk,bsk->bts", queries, keys)
    dot = jax.nn.softmax(dot, axis=2)
    out = jnp.einsum("bts,bsk->btk", dot, values).reshape(b, h, t, k)
    out = jnp.transpose(out, (0, 2, 1, 3)).reshape(b, t, h * k)
    return out @ wu


if __name__ == "__main__":
    b, t, k, heads = 2, 8, 16, 4
    key = jax.random.PRNGKey(0)
    kx, kq, kk_, kv_, ku, kx2 = jax.random.split(key, 6)

    x = jax.random.normal(kx, (b, t, k), dtype=jnp.float32)

    # PyTorch nn.Linear(k, k*heads) weight has shape (k*heads, k); we store the
    # transposed weight (k, k*heads) so y = x @ W^T.
    scale_in = (1.0 / k) ** 0.5
    scale_u = (1.0 / (k * heads)) ** 0.5
    wq = jax.random.uniform(kq, (k, k * heads), jnp.float32, -scale_in, scale_in)
    wk = jax.random.uniform(kk_, (k, k * heads), jnp.float32, -scale_in, scale_in)
    wv = jax.random.uniform(kv_, (k, k * heads), jnp.float32, -scale_in, scale_in)
    wu = jax.random.uniform(ku, (k * heads, k), jnp.float32, -scale_u, scale_u)

    # bf16 MXU inputs + f32 accumulation -> ~1e-2-level deltas vs f32 reference.
    tol = dict(atol=2e-2, rtol=2e-2)

    # 1) Single-tile case (t fits one q/kv tile).
    out = jax.block_until_ready(self_attention(x, wq, wk, wv, wu, heads=heads))
    ref = self_attention_ref(x, wq, wk, wv, wu, heads=heads)
    assert out.shape == (b, t, k)
    assert jnp.allclose(out, ref, **tol), (
        f"mismatch (single tile): max abs err {jnp.max(jnp.abs(out - ref))}")

    # 2) Multi-tile case exercising the online-softmax kv loop and q tiling.
    t2 = 16
    x2 = jax.random.normal(kx2, (b, t2, k), dtype=jnp.float32)
    out2 = jax.block_until_ready(
        self_attention(x2, wq, wk, wv, wu, heads=heads, block_q=8, block_kv=8))
    ref2 = self_attention_ref(x2, wq, wk, wv, wu, heads=heads)
    assert out2.shape == (b, t2, k)
    assert jnp.allclose(out2, ref2, **tol), (
        f"mismatch (tiled): max abs err {jnp.max(jnp.abs(out2 - ref2))}")

    print("KERNEL_OK")
</pallas_src>

<mosaic_0001>
module attributes {stable_mosaic.version = 11 : i64} {
  func.func @_qkv_projection_kernel(%arg0: i32, %arg1: i32, %arg2: memref<1x8x16xbf16, #tpu.memory_space<vmem>>, %arg3: memref<16x640xbf16, #tpu.memory_space<vmem>>, %arg4: memref<1x8x640xbf16, #tpu.memory_space<vmem>>) attributes {dimension_semantics = [#tpu.dimension_semantics<parallel>, #tpu.dimension_semantics<parallel>], iteration_bounds = array<i64: 2, 1>, scalar_prefetch = 0 : i64, scratch_operands = 0 : i64, tpu.core_type = #tpu.core_type<tc>, window_params = [{transform_indices = @transform_0, window_bounds = array<i64: 1, 8, 16>}, {pipeline_mode = #tpu.pipeline_mode<synchronous>, transform_indices = @transform_1, window_bounds = array<i64: 16, 640>}, {transform_indices = @transform_2, window_bounds = array<i64: 1, 8, 640>}]} {
    %c0 = arith.constant 0 : index
    %c0_0 = arith.constant 0 : index
    %c0_1 = arith.constant 0 : index
    %0 = vector.load %arg2[%c0, %c0_0, %c0_1] : memref<1x8x16xbf16, #tpu.memory_space<vmem>>, vector<1x8x16xbf16>
    %1 = vector.shape_cast %0 : vector<1x8x16xbf16> to vector<8x16xbf16>
    %c0_2 = arith.constant 0 : index
    %c0_3 = arith.constant 0 : index
    %2 = vector.load %arg3[%c0_2, %c0_3] : memref<16x640xbf16, #tpu.memory_space<vmem>>, vector<16x640xbf16>
    %cst = arith.constant dense<0.000000e+00> : vector<8x640xf32>
    %3 = tpu.matmul %1, %2, %cst {dimension_numbers = #tpu.dot_dimension_numbers<[1], [0], [0], [1], [0, 0, 1, 1], [], []>} : vector<8x16xbf16>, vector<16x640xbf16>, vector<8x640xf32> -> vector<8x640xf32>
    %4 = arith.truncf %3 : vector<8x640xf32> to vector<8x640xbf16>
    %c0_4 = arith.constant 0 : index
    %c0_5 = arith.constant 0 : index
    %c0_6 = arith.constant 0 : index
    %5 = vector.load %arg4[%c0_4, %c0_5, %c0_6] : memref<1x8x640xbf16, #tpu.memory_space<vmem>>, vector<1x8x640xbf16>
    %6 = vector.shape_cast %5 : vector<1x8x640xbf16> to vector<8x640xbf16>
    %7 = vector.shape_cast %4 : vector<8x640xbf16> to vector<1x8x640xbf16>
    tpu.vector_store %arg4[%c0_4, %c0_5, %c0_6], %7 {strides = array<i32>} : memref<1x8x640xbf16, #tpu.memory_space<vmem>>, vector<1x8x640xbf16>,
    return
  }
  func.func @transform_0(%arg0: i32, %arg1: i32) -> (i32, i32, i32) {
    %c0_i32 = arith.constant 0 : i32
    %c0_i32_0 = arith.constant 0 : i32
    return %arg0, %arg1, %c0_i32 : i32, i32, i32
  }
  func.func @transform_1(%arg0: i32, %arg1: i32) -> (i32, i32) {
    %c0_i32 = arith.constant 0 : i32
    %c0_i32_0 = arith.constant 0 : i32
    %c0_i32_1 = arith.constant 0 : i32
    return %c0_i32, %c0_i32_0 : i32, i32
  }
  func.func @transform_2(%arg0: i32, %arg1: i32) -> (i32, i32, i32) {
    %c0_i32 = arith.constant 0 : i32
    %c0_i32_0 = arith.constant 0 : i32
    return %arg0, %arg1, %c0_i32 : i32, i32, i32
  }
}

</mosaic_0001>

<llo_original>
// kernel: tpu_custom_call.1
$region0: #{tpu_custom_call.1}
  #allocation0 [shape = 'u32[]', space=smem, size = 0x4, offset = 0x4, fixed_abs, tag = 'smem constant byte address 0x4 - core index']
  #allocation1 [shape = 'u32[72,128]{1,0:T(1,128)}', space=vmem, size = 0x9000, scoped, tag = 'internal scratch']
  %s0 = inlined_call_operand.hbm [shape: bf16[2,8,16], index: 0, kind: input, shape index: {}]
  %s1 = inlined_call_operand.hbm [shape: bf16[16,640], index: 1, kind: input, shape index: {}]
  %s2 = inlined_call_operand.hbm [shape: bf16[2,8,640], index: 2, kind: output, shape index: {}]
  %s3 = sld [smem:[#allocation0]]
  $region49: #{tpu_custom_call.1} parent=0
    _
  %s5 = ssub.s32 1, %s3
  %s6 = scalar_select 0, %s5, %s3
  $region1: #{tpu_custom_call.1} parent=0
    #allocation2 [shape = 'u8[4096]{0}', space=vmem, size = 0x1000, scoped, tag = 'input window, operand 0']
    #allocation3 [shape = 's32[2]{0}', space=sflag, size = 0x8, scoped, tag = 'scoped memory for tpu_custom_call.1']
    #allocation4 [shape = 's32[2]{0}', space=sflag, size = 0x8, scoped, tag = 'scoped memory for tpu_custom_call.1']
    #allocation5 [shape = 'u8[20480]{0}', space=vmem, size = 0x5000, scoped, tag = 'input window, operand 1, single buffered']
    #allocation6 [shape = 's32[1]{0}', space=sflag, size = 0x4, scoped, tag = 'scoped memory for tpu_custom_call.1']
    #allocation7 [shape = 'u8[20480]{0}', space=vmem, size = 0x5000, scoped, tag = 'output window, operand 0']
    %7 = vsyncpa [#allocation3], 0
    %s8 = scalar_lea.sflag [#allocation3], 1
    %9 = vsyncpa %s8, 0
    %10 = vsyncpa [#allocation6], 0
    %11 = vsyncpa [#allocation4], 0
    %s12 = scalar_lea.sflag [#allocation4], 1
    %13 = vsyncpa %s12, 0
    loop: start=0, step=1, limit=4
    $region2: #{tpu_custom_call.1} parent=1 // loop_pre_header
      _
    $region3: #{tpu_custom_call.1} parent=1 // loop_header
      %s15 = sphi 0, %s19
      %p16 = scmp.ge.s32.totalorder %s15, 4
      %s22 = sphi 0, %s34
      %s23 = sphi 0, %s30
      %s24 = sphi 0, %s22
      %s25 = sphi 0, %s23
      %s26 = sphi 0, %s24
      %s27 = sphi 0, %s25
      %s39 = sphi 0, %s41
      %s42 = sphi 0, %s39
      %s43 = sphi 0, %s42
      %s59 = sphi 0, %s43
      %s63 = sphi 0, %s63
      %s65 = sphi 0, %s63
      %s66 = sphi 0, %s65
      %s80 = sphi 0, %s66
      %s88 = sphi 0, %s90
      %s91 = sphi 0, %s88
      %s92 = sphi 0, %s91
      %s108 = sphi 0, %s92
    $region4: #{tpu_custom_call.1} parent=1 // loop_header_branch
      %18 = sbr.rel (%p16) target = $region8
    $region5: #{tpu_custom_call.1} parent=1 // loop_body
      %s20 = ssub.s32 %s15, 1
      %s21 = ssub.s32 %s15, 2
      %s28 = sadd.s32 1, %s23
      %p29 = scmp.ge.s32.totalorder %s28, 1
      %s30 = scalar_select %p29, 0, %s28
      %s31 = sadd.s32 1, %s22
      %s32 = scalar_select %p29, %s31, %s22
      %p33 = scmp.ge.s32.totalorder %s32, 2
      %s34 = scalar_select %p33, 0, %s32
      %s35 = ssub.s32 %s22, %s34
      %s36 = ssub.s32 %s23, %s30
      %s37 = sor.u32 %s35, %s36
      %p38 = scmp.eq.s32.totalorder %s37, 0
      %s40 = sadd.s32 %s39, 1
      %s41 = scalar_select %p38, %s39, %s40
      %p44 = pneg %p38
      %p45 = scmp.eq.s32.totalorder %s15, 1
      %p46 = por %p44, %p45
      %p47 = scmp.ne.s32.totalorder %s39, %s42
      %p48 = scmp.eq.s32.totalorder %s15, 0
      %p49 = por %p47, %p48
      %p50 = scmp.ne.s32.totalorder %s39, %s42
      %p51 = scmp.eq.s32.totalorder %s20, 1
      %p52 = por %p50, %p51
      %p53 = scmp.ne.s32.totalorder %s42, %s43
      %p54 = scmp.eq.s32.totalorder %s20, 0
      %p55 = por %p53, %p54
      %p56 = scmp.ne.s32.totalorder %s42, %s43
      %p57 = scmp.eq.s32.totalorder %s21, 1
      %p58 = por %p56, %p57
      %p60 = scmp.ne.s32.totalorder %s43, %s59
      %p61 = scmp.eq.s32.totalorder %s21, 0
      %p62 = por %p60, %p61
      %s64 = sadd.s32 %s63, 1
      %p67 = scmp.eq.s32.totalorder %s15, 1
      %p68 = scmp.ne.s32.totalorder %s63, %s65
      %p69 = scmp.eq.s32.totalorder %s15, 0
      %p70 = por %p68, %p69
      %p71 = scmp.ne.s32.totalorder %s63, %s65
      %p72 = scmp.eq.s32.totalorder %s20, 1
      %p73 = por %p71, %p72
      %p74 = scmp.ne.s32.totalorder %s65, %s66
      %p75 = scmp.eq.s32.totalorder %s20, 0
      %p76 = por %p74, %p75
      %p77 = scmp.ne.s32.totalorder %s65, %s66
      %p78 = scmp.eq.s32.totalorder %s21, 1
      %p79 = por %p77, %p78
      %p81 = scmp.ne.s32.totalorder %s66, %s80
      %p82 = scmp.eq.s32.totalorder %s21, 0
      %p83 = por %p81, %p82
      %s84 = ssub.s32 %s22, %s34
      %s85 = ssub.s32 %s23, %s30
      %s86 = sor.u32 %s84, %s85
      %p87 = scmp.eq.s32.totalorder %s86, 0
      %s89 = sadd.s32 %s88, 1
      %s90 = scalar_select %p87, %s88, %s89
      %p93 = pneg %p87
      %p94 = scmp.eq.s32.totalorder %s15, 1
      %p95 = por %p93, %p94
      %p96 = scmp.ne.s32.totalorder %s88, %s91
      %p97 = scmp.eq.s32.totalorder %s15, 0
      %p98 = por %p96, %p97
      %p99 = scmp.ne.s32.totalorder %s88, %s91
      %p100 = scmp.eq.s32.totalorder %s20, 1
      %p101 = por %p99, %p100
      %p102 = scmp.ne.s32.totalorder %s91, %s92
      %p103 = scmp.eq.s32.totalorder %s20, 0
      %p104 = por %p102, %p103
      %p105 = scmp.ne.s32.totalorder %s91, %s92
      %p106 = scmp.eq.s32.totalorder %s21, 1
      %p107 = por %p105, %p106
      %p109 = scmp.ne.s32.totalorder %s92, %s108
      %p110 = scmp.eq.s32.totalorder %s21, 0
      %p111 = por %p109, %p110
      %p112 = scmp.le.s32.totalorder 1, %s15
      %p113 = scmp.lt.s32.totalorder %s15, 3
      %p114 = pnand %p112, %p113
      %p115 = pneg %p114
      // Predicated region
      $region9: #{tpu_custom_call.1} parent=5 // pred_check
        _
      $region10: #{tpu_custom_call.1} parent=5 // pred_check_branch
        %117 = sbr.rel (%p114) target = $region12
      $region11: #{tpu_custom_call.1} parent=5 // pred_region
        %s118 = ssub.s32 %s15, 1
        // Predicated region
        $region13: #{tpu_custom_call.1} parent=11 // pred_check
          %p119 = pneg %p76
        $region14: #{tpu_custom_call.1} parent=11 // pred_check_branch
          %121 = sbr.rel (%p119) target = $region16
        $region15: #{tpu_custom_call.1} parent=11 // pred_region
          %123 = vsyncadd [#allocation6], 0
          %s124 = sshll.u32 %s1, 4
          %s125 = int_to_ptr.hbm [resolvable:$true] %s124
          %s126 = sshll.u32 [#allocation5], 4
          %s127 = int_to_ptr.vmem [resolvable:$true] %s126
          %132 = dma.hbm_to_vmem [thread:$0]  %s125, 640, %s127, [#allocation6], 320, 320, 20
        $region16: #{tpu_custom_call.1} parent=11 // pred_fallthru
          _
      $region12: #{tpu_custom_call.1} parent=5 // pred_fallthru
        _
      %p133 = scmp.lt.s32.totalorder %s15, 2
      // Predicated region
      $region17: #{tpu_custom_call.1} parent=5 // pred_check
        %p134 = pneg %p133
      $region18: #{tpu_custom_call.1} parent=5 // pred_check_branch
        %136 = sbr.rel (%p134) target = $region20
      $region19: #{tpu_custom_call.1} parent=5 // pred_region
        // Predicated region
        $region21: #{tpu_custom_call.1} parent=19 // pred_check
          %p137 = pneg %p49
        $region22: #{tpu_custom_call.1} parent=19 // pred_check_branch
          %139 = sbr.rel (%p137) target = $region24
        $region23: #{tpu_custom_call.1} parent=19 // pred_region
          %s140 = sand.u32 %s39, 1
          %s141 = scalar_lea.sflag [#allocation3], %s140
          %s142 = sand.u32 %s39, 1
          %s143 = smul.addr %s142, 4
          %s144 = scalar_lea.vmem [#allocation2], %s143
          %146 = vsyncadd %s141, 0
          %s147 = sadd.s32 %s23, %s22
          %s148 = smul.addr %s147, 4
          %s149 = scalar_lea.hbm %s0, %s148
          %s151 = sshll.u32 %s149, 4
          %s152 = int_to_ptr.hbm [resolvable:$true] %s151
          %s153 = sshll.u32 %s144, 4
          %s154 = int_to_ptr.vmem [resolvable:$true] %s153
          %156 = dma.hbm_to_vmem [thread:$0]  %s152, 64, %s154, %s141
        $region24: #{tpu_custom_call.1} parent=19 // pred_fallthru
          _
      $region20: #{tpu_custom_call.1} parent=5 // pred_fallthru
        _
      %p157 = scmp.le.s32.totalorder 1, %s15
      %p158 = scmp.lt.s32.totalorder %s15, 3
      %p159 = pnand %p157, %p158
      %p160 = pneg %p159
      // Predicated region
      $region25: #{tpu_custom_call.1} parent=5 // pred_check
        _
      $region26: #{tpu_custom_call.1} parent=5 // pred_check_branch
        %162 = sbr.rel (%p159) target = $region28
      $region27: #{tpu_custom_call.1} parent=5 // pred_region
        %s163 = ssub.s32 %s15, 1
        %s164 = sand.u32 %s42, 1
        %s165 = scalar_lea.sflag [#allocation3], %s164
        %s166 = sand.u32 %s42, 1
        %s167 = smul.addr %s166, 4
        %s168 = scalar_lea.vmem [#allocation2], %s167
        // Predicated region
        $region29: #{tpu_custom_call.1} parent=27 // pred_check
          %p169 = pneg %p55
        $region30: #{tpu_custom_call.1} parent=27 // pred_check_branch
          %171 = sbr.rel (%p169) target = $region32
        $region31: #{tpu_custom_call.1} parent=27 // pred_region
          %173 = dma.done %s165, 64
        $region32: #{tpu_custom_call.1} parent=27 // pred_fallthru
          _
        // Predicated region
        $region33: #{tpu_custom_call.1} parent=27 // pred_check
          %p174 = pneg %p76
        $region34: #{tpu_custom_call.1} parent=27 // pred_check_branch
          %176 = sbr.rel (%p174) target = $region36
        $region35: #{tpu_custom_call.1} parent=27 // pred_region
          %178 = dma.done [#allocation6], 640
        $region36: #{tpu_custom_call.1} parent=27 // pred_fallthru
          _
        %s179 = sand.u32 %s42, 1
        %s180 = scalar_lea.sflag [#allocation3], %s179
        %s181 = sand.u32 %s42, 1
        %s182 = smul.addr %s181, 4
        %s183 = scalar_lea.vmem [#allocation2], %s182
        %p184 = pneg %p55
        %p185 = pneg %p52
        %p186 = pneg %p76
        %p187 = pneg %p73
        %p188 = pneg %p104
        %p189 = pneg %p101
        %s190 = sand.u32 %s91, 1
        %s191 = scalar_lea.sflag [#allocation4], %s190
        %s192 = sand.u32 %s91, 1
        %s193 = smul.addr %s192, 20
        %s194 = scalar_lea.vmem [#allocation7], %s193
        %v196 = vld [vmem:[%s168] sm:$0xf]
        %v197 = vld [vmem:[#allocation5] sm:$0xff]
        %v198 = vld [vmem:[#allocation5 + $0x8] sm:$0xff]
        %v199 = vld [vmem:[#allocation5 + $0x10] sm:$0xf]
        %v200 = vld [vmem:[#allocation5 + $0x14] sm:$0xff]
        %v201 = vld [vmem:[#allocation5 + $0x1c] sm:$0xff]
        %v202 = vld [vmem:[#allocation5 + $0x24] sm:$0xf]
        %v209 = vunpack.c.l.b16 %v197
        %v210 = vunpack.c.h.b16 %v197
        %v211 = vunpack.c.l.b16 %v198
        %v212 = vunpack.c.h.b16 %v198
        %v213 = vunpack.c.l.b16 %v199
        %v214 = vunpack.c.l.b16 %v200
        %v215 = vunpack.c.h.b16 %v200
        %v216 = vunpack.c.l.b16 %v201
        %v217 = vunpack.c.h.b16 %v201
        %v218 = vunpack.c.l.b16 %v202
        %v219 = vpack.c.b16 %v214, %v209
        %v220 = vpack.c.b16 %v215, %v210
        %v221 = vpack.c.b16 %v216, %v211
        %v222 = vpack.c.b16 %v217, %v212
        %v223 = vpack.c.b16 %v218, %v213
        %vm229 = vcmask 130048
        %v231 = vsel %vm229, %v196, 0
        %233 = vmatpush.bf16.msra.mxu0 0
        %234 = vmatpush.bf16.msra.mxu0 0
        %235 = vmatpush.bf16.msra.mxu0 0
        %236 = vmatpush.bf16.msra.mxu0 0
        %237 = vmatpush.bf16.msra.mxu0 0
        %238 = vmatpush.bf16.msra.mxu0 0
        %239 = vmatpush.bf16.msra.mxu0 0
        %240 = vmatpush.bf16.msra.mxu0 %v219
        %241 = vmatmul.bf16.gmra.mxu0 %v231
        %v242 = vpop.f32.mrf.mxu0
        %v243 = vadd.f32 0.0, %v242
        %v244 = vpop.f32.mrf.mxu0
        %245 = vdwg.mxu0
        %246 = vmatpush.bf16.msra.mxu0 0
        %247 = vmatpush.bf16.msra.mxu0 0
        %248 = vmatpush.bf16.msra.mxu0 0
        %249 = vmatpush.bf16.msra.mxu0 0
        %250 = vmatpush.bf16.msra.mxu0 0
        %251 = vmatpush.bf16.msra.mxu0 0
        %252 = vmatpush.bf16.msra.mxu0 0
        %253 = vmatpush.bf16.msra.mxu0 %v220
        %254 = vmatmul.bf16.gmra.mxu0 %v231
        %v255 = vpop.f32.mrf.mxu0
        %v256 = vadd.f32 0.0, %v255
        %v257 = vpop.f32.mrf.mxu0
        %258 = vdwg.mxu0
        %259 = vmatpush.bf16.msra.mxu0 0
        %260 = vmatpush.bf16.msra.mxu0 0
        %261 = vmatpush.bf16.msra.mxu0 0
        %262 = vmatpush.bf16.msra.mxu0 0
        %263 = vmatpush.bf16.msra.mxu0 0
        %264 = vmatpush.bf16.msra.mxu0 0
        %265 = vmatpush.bf16.msra.mxu0 0
        %266 = vmatpush.bf16.msra.mxu0 %v221
        %267 = vmatmul.bf16.gmra.mxu0 %v231
        %v268 = vpop.f32.mrf.mxu0
        %v269 = vadd.f32 0.0, %v268
        %v270 = vpop.f32.mrf.mxu0
        %271 = vdwg.mxu0
        %272 = vmatpush.bf16.msra.mxu0 0
        %273 = vmatpush.bf16.msra.mxu0 0
        %274 = vmatpush.bf16.msra.mxu0 0
        %275 = vmatpush.bf16.msra.mxu0 0
        %276 = vmatpush.bf16.msra.mxu0 0
        %277 = vmatpush.bf16.msra.mxu0 0
        %278 = vmatpush.bf16.msra.mxu0 0
        %279 = vmatpush.bf16.msra.mxu0 %v222
        %280 = vmatmul.bf16.gmra.mxu0 %v231
        %v281 = vpop.f32.mrf.mxu0
        %v282 = vadd.f32 0.0, %v281
        %v283 = vpop.f32.mrf.mxu0
        %284 = vdwg.mxu0
        %285 = vmatpush.bf16.msra.mxu0 0
        %286 = vmatpush.bf16.msra.mxu0 0
        %287 = vmatpush.bf16.msra.mxu0 0
        %288 = vmatpush.bf16.msra.mxu0 0
        %289 = vmatpush.bf16.msra.mxu0 0
        %290 = vmatpush.bf16.msra.mxu0 0
        %291 = vmatpush.bf16.msra.mxu0 0
        %292 = vmatpush.bf16.msra.mxu0 %v223
        %293 = vmatmul.bf16.gmra.mxu0 %v231
        %v294 = vpop.f32.mrf.mxu0
        %v295 = vadd.f32 0.0, %v294
        %v296 = vpop.f32.mrf.mxu0
        %297 = vdwg.mxu0
        %v298 = vpack.c.bf16 %v256, %v243
        %v299 = vpack.c.bf16 %v282, %v269
        %v300 = vpack.c.bf16 %v295, %v295
        %301 = vst [vmem:[%s194] sm:$0xff] %v298
        %302 = vst [vmem:[%s194 + $0x8] sm:$0xff] %v299
        %303 = vst [vmem:[%s194 + $0x10] sm:$0xf] %v300
        %s304 = sand.u32 %s91, 1
        %s305 = scalar_lea.sflag [#allocation4], %s304
        %s306 = sand.u32 %s91, 1
        %s307 = smul.addr %s306, 20
        %s308 = scalar_lea.vmem [#allocation7], %s307
        // Predicated region
        $region37: #{tpu_custom_call.1} parent=27 // pred_check
          %p309 = pneg %p101
        $region38: #{tpu_custom_call.1} parent=27 // pred_check_branch
          %311 = sbr.rel (%p309) target = $region40
        $region39: #{tpu_custom_call.1} parent=27 // pred_region
          %313 = vsyncadd %s305, 0
          %s314 = smul.addr %s25, 5
          %s315 = smul.addr %s24, 5
          %s316 = sadd.s32 %s314, %s315
          %s317 = smul.addr %s316, 4
          %s318 = scalar_lea.hbm %s2, %s317
          %s320 = sshll.u32 %s308, 4
          %s321 = int_to_ptr.vmem [resolvable:$true] %s320
          %s322 = sshll.u32 %s318, 4
          %s323 = int_to_ptr.hbm [resolvable:$true] %s322
          %325 = dma.vmem_to_hbm [thread:$0]  %s321, 320, %s323, %s305
        $region40: #{tpu_custom_call.1} parent=27 // pred_fallthru
          _
      $region28: #{tpu_custom_call.1} parent=5 // pred_fallthru
        _
      %p326 = scmp.le.s32.totalorder 2, %s15
      // Predicated region
      $region41: #{tpu_custom_call.1} parent=5 // pred_check
        %p327 = pneg %p326
      $region42: #{tpu_custom_call.1} parent=5 // pred_check_branch
        %329 = sbr.rel (%p327) target = $region44
      $region43: #{tpu_custom_call.1} parent=5 // pred_region
        %s330 = ssub.s32 %s15, 2
        // Predicated region
        $region45: #{tpu_custom_call.1} parent=43 // pred_check
          %p331 = pneg %p107
        $region46: #{tpu_custom_call.1} parent=43 // pred_check_branch
          %333 = sbr.rel (%p331) target = $region48
        $region47: #{tpu_custom_call.1} parent=43 // pred_region
          %s334 = sand.u32 %s92, 1
          %s335 = scalar_lea.sflag [#allocation4], %s334
          %s336 = sand.u32 %s92, 1
          %s337 = smul.addr %s336, 20
          %s338 = scalar_lea.vmem [#allocation7], %s337
          %340 = dma.done %s335, 320
        $region48: #{tpu_custom_call.1} parent=43 // pred_fallthru
          _
      $region44: #{tpu_custom_call.1} parent=5 // pred_fallthru
        _
    $region6: #{tpu_custom_call.1} parent=1 // loop_footer
      %s19 = sadd.s32 1, %s15
    $region7: #{tpu_custom_call.1} parent=1 // loop_footer_branch
      %14 = sbr.rel target = $region3
    $region8: #{tpu_custom_call.1} parent=1 // loop_exit
      _
    %341 = vsyncpa [#allocation3], 1
    %s342 = scalar_lea.sflag [#allocation3], 1
    %343 = vsyncpa %s342, 1
    %344 = vsyncpa [#allocation6], 1
    %345 = vsyncpa [#allocation4], 1
    %s346 = scalar_lea.sflag [#allocation4], 1
    %347 = vsyncpa %s346, 1

</llo_original>
